<compile_context>
chip_gen: v6e
topology: v6e:2x2x1
jax: 0.10.0
libtpu: 0.0.40
codegen_flags: <defaults>
</compile_context>

<pallas_src>
import functools
import math

import jax
import jax.numpy as jnp
from jax.experimental import pallas as pl
from jax.experimental.pallas import tpu as pltpu

_LANES = 128
_MC_BLOCK_BYTES = 2 * 1024 * 1024      # cap on logits bytes per multiclass block
_MC_MAX_TP = 32768                     # cap on lane tile (bounds 8x-padded (1,TP) temps)
_BCE_BLOCK_ROWS = 4096                 # (4096, 128) f32 = 2 MiB per BCE input block
_TARGET_PARALLEL = 8                   # desired parallel grid slots (batch x pixel-outer)
_VMEM_LIMIT_BYTES = 32 * 1024 * 1024   # safe on v5e/v6e/v7x; raises v5e's 16 MiB default


# ---------------------------------------------------------------------------
# Multiclass weighted cross-entropy (== nn.CrossEntropyLoss(weight, ignore_index))
# Block = (1, C, TP): classes on sublanes, pixels on lanes (native NCHW layout,
# no wrapper-side moveaxis).  Per-(image, outer-tile) lane partials accumulate in
# the resident output block across the inner pixel-tile axis.
# ---------------------------------------------------------------------------
def _wce_kernel(x_ref, t_ref, w_ref, loss_ref, wsum_ref, *,
                hw, tp, n_inner, ignore_index, check_ignore):
    o = pl.program_id(1)
    j = pl.program_id(2)

    @pl.when(j == 0)
    def _():
        loss_ref[...] = jnp.zeros_like(loss_ref)
        wsum_ref[...] = jnp.zeros_like(wsum_ref)

    x = x_ref[0].astype(jnp.float32)          # (C, TP) logits, cast in-kernel
    t = t_ref[0].astype(jnp.int32)            # (1, TP) labels, widened in-kernel
    w = w_ref[...].astype(jnp.float32)        # (C, 1)  class weights

    c = x.shape[0]
    lane = jax.lax.broadcasted_iota(jnp.int32, (1, tp), 1)
    valid = (o * n_inner + j) * tp + lane < hw        # ragged pixel tail
    if check_ignore:                                   # only when ignore_index in [0, C)
        valid = valid & (t != ignore_index)

    # Stable log-sum-exp over the class (sublane) axis on the RAW logits; garbage
    # in dead tail lanes stays lane-local and is discarded by the final select
    # (must be a select, not a multiply: 0 * inf would reintroduce NaN).
    m = jnp.max(x, axis=0, keepdims=True)                               # (1, TP)
    lse = m + jnp.log(jnp.sum(jnp.exp(x - m), axis=0, keepdims=True))   # (1, TP)

    # Gather logit[target] / weight[target] via a one-hot built from a (C, 1)
    # iota (no (C, TP) iota / broadcast materialization).
    cls = jax.lax.broadcasted_iota(jnp.int32, (c, 1), 0)
    onehot = cls == t                                                    # (C, TP)
    logit_t = jnp.sum(jnp.where(onehot, x, 0.0), axis=0, keepdims=True)  # (1, TP)
    w_t = jnp.sum(jnp.where(onehot, w, 0.0), axis=0, keepdims=True)      # (1, TP)
    # (pixels with target == ignore_index outside [0,C) get w_t == 0 automatically)

    loss_ref[0, 0] += jnp.where(valid, w_t * (lse - logit_t), 0.0)
    wsum_ref[0, 0] += jnp.where(valid, w_t, 0.0)


def _multiclass_ce_sums(inputs, targets, class_weights, ignore_index, tile_px=None):
    n, c = inputs.shape[0], inputs.shape[1]
    hw = int(math.prod(inputs.shape[2:])) if inputs.ndim > 2 else 1

    x3 = inputs.reshape(n, c, hw)                       # free reshape, native dtype
    t3 = targets.reshape(n, 1, hw)                      # free reshape, native int dtype
    w2 = class_weights.reshape(c, 1).astype(jnp.float32)

    # Lane tile: >= 512 lanes where possible, logits block <= ~2 MiB, and <= 32768
    # lanes so the 8x-padded (1,TP) row temporaries / resident outputs fit all
    # generations' VMEM with double buffering.
    itemsize = x3.dtype.itemsize
    cap = max(4 * _LANES, (_MC_BLOCK_BYTES // (itemsize * c)) // _LANES * _LANES)
    cap = min(cap, _MC_MAX_TP)
    if tile_px is not None:
        cap = tile_px
    tp = hw if hw <= cap else cap
    n_tiles = pl.cdiv(hw, tp)

    # Split pixel tiles into (parallel outer) x (accumulated inner) so small-batch
    # inputs still expose parallel grid work (v7x megacore).
    n_outer = min(n_tiles, max(1, _TARGET_PARALLEL // max(n, 1)))
    n_inner = pl.cdiv(n_tiles, n_outer)
    n_outer = pl.cdiv(n_tiles, n_inner)
    last_tile = n_tiles - 1

    check_ignore = 0 <= ignore_index < c

    def xt_map(i, o, j):
        # Clamp duplicated trailing slots to the last real tile; their pixels are
        # >= hw so the in-kernel mask zeroes their contribution.
        return (i, 0, jnp.minimum(o * n_inner + j, last_tile))

    def out_map(i, o, j):
        return (i, o, 0, 0)

    loss_part, wsum_part = pl.pallas_call(
        functools.partial(_wce_kernel, hw=hw, tp=tp, n_inner=n_inner,
                          ignore_index=ignore_index, check_ignore=check_ignore),
        grid=(n, n_outer, n_inner),
        in_specs=[pl.BlockSpec((1, c, tp), xt_map),
                  pl.BlockSpec((1, 1, tp), xt_map),
                  pl.BlockSpec((c, 1), lambda i, o, j: (0, 0))],
        out_specs=[pl.BlockSpec((1, 1, 1, tp), out_map),
                   pl.BlockSpec((1, 1, 1, tp), out_map)],
        out_shape=(jax.ShapeDtypeStruct((n, n_outer, 1, tp), jnp.float32),
                   jax.ShapeDtypeStruct((n, n_outer, 1, tp), jnp.float32)),
        compiler_params=pltpu.CompilerParams(
            dimension_semantics=("parallel", "parallel", "arbitrary"),
            vmem_limit_bytes=_VMEM_LIMIT_BYTES),
    )(x3, t3, w2)
    return jnp.sum(loss_part), jnp.sum(wsum_part)


# ---------------------------------------------------------------------------
# Binary path (== nn.BCEWithLogitsLoss(pos_weight)) for inputs with C == 1.
# Each grid step consumes a (rows, 128) block and writes its own (1, 128)
# lane-partial row -> fully parallel grid; ragged rows masked by row count.
# ---------------------------------------------------------------------------
def _bce_kernel(x_ref, t_ref, pw_ref, out_ref, *, rows, total_rows):
    i = pl.program_id(0)

    x = x_ref[...].astype(jnp.float32)      # (rows, 128), cast in-kernel
    t = t_ref[...].astype(jnp.float32)
    pw = pw_ref[0]                          # scalar from SMEM

    ridx = jax.lax.broadcasted_iota(jnp.int32, (rows, _LANES), 0)
    ok = (i * rows + ridx) < total_rows     # row-count mask: no 32-bit flat-index math

    # numerically stable softplus(x) / softplus(-x)
    sp_pos = jnp.maximum(x, 0.0) + jnp.log1p(jnp.exp(-jnp.abs(x)))   # softplus(x)
    sp_neg = sp_pos - x                                              # softplus(-x)
    loss = pw * (t * sp_neg) + (1.0 - t) * sp_pos
    loss = jnp.where(ok, loss, 0.0)         # select (not multiply): drops NaN/Inf rows

    out_ref[0] = jnp.sum(loss, axis=0, keepdims=True)   # (1, 128) lane partials


def _binary_bce_sum(inputs, targets, pos_weight):
    total = inputs.size
    xf = inputs.reshape(-1)                 # free reshapes, native dtypes
    tf = targets.reshape(-1)
    r = total // _LANES
    tail = total - r * _LANES

    pw = jnp.asarray(pos_weight, jnp.float32)

    tail_sum = jnp.float32(0.0)
    if tail:
        # <128 trailing elements: fused jnp pass over just the tail bytes.
        xt = xf[r * _LANES:].astype(jnp.float32)
        tt = tf[r * _LANES:].astype(jnp.float32)
        sp_pos = jnp.maximum(xt, 0.0) + jnp.log1p(jnp.exp(-jnp.abs(xt)))
        sp_neg = sp_pos - xt
        tail_sum = jnp.sum(pw * tt * sp_neg + (1.0 - tt) * sp_pos)
    if r == 0:
        return tail_sum

    if tail:
        # Rare unaligned case: kernel covers the 128-aligned prefix (the slice may
        # materialize; the common aligned case below is a pure zero-copy reshape).
        x2 = xf[:r * _LANES].reshape(r, _LANES)
        t2 = tf[:r * _LANES].reshape(r, _LANES)
    else:
        x2 = xf.reshape(r, _LANES)          # zero-copy view, no jnp.pad
        t2 = tf.reshape(r, _LANES)

    rows = min(r, _BCE_BLOCK_ROWS)
    n_blocks = pl.cdiv(r, rows)
    pw1 = pw.reshape(1)

    part = pl.pallas_call(
        functools.partial(_bce_kernel, rows=rows, total_rows=r),
        grid=(n_blocks,),
        in_specs=[pl.BlockSpec((rows, _LANES), lambda i: (i, 0)),
                  pl.BlockSpec((rows, _LANES), lambda i: (i, 0)),
                  pl.BlockSpec(memory_space=pltpu.MemorySpace.SMEM)],
        out_specs=pl.BlockSpec((1, 1, _LANES), lambda i: (i, 0, 0)),
        out_shape=jax.ShapeDtypeStruct((n_blocks, 1, _LANES), jnp.float32),
        compiler_params=pltpu.CompilerParams(
            dimension_semantics=("parallel",),
            vmem_limit_bytes=_VMEM_LIMIT_BYTES),
    )(x2, t2, pw1)
    return jnp.sum(part) + tail_sum


# ---------------------------------------------------------------------------
# Module-equivalent forward
# ---------------------------------------------------------------------------
def weighted_cross_entropy_loss(inputs, targets, class_weights=None,
                                ignore_index=-100, reduction="mean"):
    """Forward pass of medvision WeightedCrossEntropyLoss."""
    c = inputs.shape[1]
    if c == 1:
        # binary branch -> BCEWithLogitsLoss(pos_weight = w1/w0)
        if targets.ndim == inputs.ndim - 1:
            targets = targets[:, None, ...]
        if class_weights is not None and len(class_weights) == 2:
            cw = jnp.asarray(class_weights, jnp.float32)
            pos_weight = cw[1] / cw[0]
        else:
            pos_weight = jnp.float32(1.0)
        if reduction == "none":
            # TODO(synk): reduction='none' (per-element loss map) not implemented in-kernel.
            raise NotImplementedError("reduction='none' not supported")
        loss_sum = _binary_bce_sum(inputs, targets, pos_weight)
        return loss_sum / inputs.size if reduction == "mean" else loss_sum
    else:
        # multiclass branch -> CrossEntropyLoss(weight, ignore_index)
        if targets.ndim == inputs.ndim:
            targets = jnp.squeeze(targets, axis=1)
        if not jnp.issubdtype(targets.dtype, jnp.integer):
            targets = targets.astype(jnp.int32)       # matches torch .long()
        if class_weights is None:
            w = jnp.ones((c,), jnp.float32)
        else:
            w = jnp.asarray(class_weights, jnp.float32)
        if reduction == "none":
            # TODO(synk): reduction='none' (per-pixel loss map) not implemented in-kernel.
            raise NotImplementedError("reduction='none' not supported")
        loss_sum, w_sum = _multiclass_ce_sums(inputs, targets, w, ignore_index)
        # NOTE: if every target equals ignore_index, w_sum == 0 and 'mean' returns
        # nan/inf, matching PyTorch behavior.
        return loss_sum / w_sum if reduction == "mean" else loss_sum


# ---------------------------------------------------------------------------
# Pure-JAX references for verification
# ---------------------------------------------------------------------------
def _ref_multiclass(inputs, targets, w, ignore_index):
    logp = jax.nn.log_softmax(inputs.astype(jnp.float32), axis=1)
    logp = jnp.moveaxis(logp, 1, -1).reshape(-1, inputs.shape[1])
    t = targets.reshape(-1)
    valid = t != ignore_index
    t_safe = jnp.where(valid, t, 0)
    picked = jnp.take_along_axis(logp, t_safe[:, None], axis=1)[:, 0]
    w_t = w[t_safe]
    num = jnp.sum(jnp.where(valid, -w_t * picked, 0.0))
    den = jnp.sum(jnp.where(valid, w_t, 0.0))
    return num / den


def _ref_binary(inputs, targets, pos_weight):
    x = inputs.astype(jnp.float32)
    t = targets.astype(jnp.float32)
    log1pexp = jnp.log1p(jnp.exp(-jnp.abs(x)))
    sp_pos = jnp.maximum(x, 0.0) + log1pexp
    sp_neg = jnp.maximum(-x, 0.0) + log1pexp
    return jnp.mean(pos_weight * t * sp_neg + (1.0 - t) * sp_pos)


if __name__ == "__main__":
    key = jax.random.PRNGKey(0)
    k1, k2, k3, k4, k5, k6, k7, k8 = jax.random.split(key, 8)

    # ---- multiclass: NCHW logits (2, 4, 16, 16), int targets (2, 16, 16)
    N, C, H, W = 2, 4, 16, 16
    logits = jax.random.normal(k1, (N, C, H, W), jnp.float32)
    targets = jax.random.randint(k2, (N, H, W), 0, C, jnp.int32)
    ignore_mask = jax.random.bernoulli(k3, 0.1, (N, H, W))
    targets = jnp.where(ignore_mask, -100, targets)
    class_weights = jnp.array([1.0, 2.0, 0.5, 1.5], jnp.float32)

    loss_mc = weighted_cross_entropy_loss(logits, targets,
                                          class_weights=class_weights,
                                          ignore_index=-100, reduction="mean")
    loss_mc = jax.block_until_ready(loss_mc)
    ref_mc = _ref_multiclass(logits, targets, class_weights, -100)
    assert jnp.allclose(loss_mc, ref_mc, rtol=1e-5, atol=1e-5), (loss_mc, ref_mc)

    # ---- multiclass with forced pixel tiling: ragged tail + parallel outer split
    N2, C2, H2, W2 = 1, 3, 5, 50                     # hw = 250 (not a multiple of 128)
    logits2 = jax.random.normal(k4, (N2, C2, H2, W2), jnp.float32)
    targets2 = jax.random.randint(k5, (N2, H2, W2), 0, C2, jnp.int32)
    targets2 = jnp.where(jax.random.bernoulli(k6, 0.1, (N2, H2, W2)), -100, targets2)
    w3 = jnp.array([1.0, 0.5, 2.0], jnp.float32)
    ls, ws = _multiclass_ce_sums(logits2, targets2, w3, -100, tile_px=128)
    loss_mc2 = jax.block_until_ready(ls / ws)
    ref_mc2 = _ref_multiclass(logits2, targets2, w3, -100)
    assert jnp.allclose(loss_mc2, ref_mc2, rtol=1e-5, atol=1e-5), (loss_mc2, ref_mc2)

    # ---- binary: NCHW logits (2, 1, 16, 16), targets (2, 16, 16) in {0, 1}
    blogits = jax.random.normal(k7, (N, 1, H, W), jnp.float32)
    btargets = jax.random.randint(k8, (N, H, W), 0, 2, jnp.int32)
    bweights = jnp.array([1.0, 3.0], jnp.float32)

    loss_bin = weighted_cross_entropy_loss(blogits, btargets,
                                           class_weights=bweights,
                                           reduction="mean")
    loss_bin = jax.block_until_ready(loss_bin)
    ref_bin = _ref_binary(blogits, btargets[:, None, ...], bweights[1] / bweights[0])
    assert jnp.allclose(loss_bin, ref_bin, rtol=1e-5, atol=1e-5), (loss_bin, ref_bin)

    # ---- binary with numel not a multiple of 128 (tail summed in the wrapper)
    blogits2 = jax.random.normal(k3, (1, 1, 6, 25), jnp.float32)   # 150 elements
    btargets2 = jax.random.randint(k6, (1, 6, 25), 0, 2, jnp.int32)
    loss_bin2 = weighted_cross_entropy_loss(blogits2, btargets2,
                                            class_weights=bweights,
                                            reduction="mean")
    loss_bin2 = jax.block_until_ready(loss_bin2)
    ref_bin2 = _ref_binary(blogits2, btargets2[:, None, ...], bweights[1] / bweights[0])
    assert jnp.allclose(loss_bin2, ref_bin2, rtol=1e-5, atol=1e-5), (loss_bin2, ref_bin2)

    print("KERNEL_OK")
</pallas_src>

<mosaic_0001>
module attributes {stable_mosaic.version = 11 : i64} {
  func.func @_wce_kernel(%arg0: i32, %arg1: i32, %arg2: i32, %arg3: memref<1x4x256xf32, #tpu.memory_space<vmem>>, %arg4: memref<1x1x256xi32, #tpu.memory_space<vmem>>, %arg5: memref<4x1xf32, #tpu.memory_space<vmem>>, %arg6: memref<1x1x1x256xf32, #tpu.memory_space<vmem>>, %arg7: memref<1x1x1x256xf32, #tpu.memory_space<vmem>>) attributes {dimension_semantics = [#tpu.dimension_semantics<parallel>, #tpu.dimension_semantics<parallel>, #tpu.dimension_semantics<arbitrary>], iteration_bounds = array<i64: 2, 1, 1>, scalar_prefetch = 0 : i64, scratch_operands = 0 : i64, tpu.core_type = #tpu.core_type<tc>, window_params = [{transform_indices = @transform_0, window_bounds = array<i64: 1, 4, 256>}, {transform_indices = @transform_1, window_bounds = array<i64: 1, 1, 256>}, {pipeline_mode = #tpu.pipeline_mode<synchronous>, transform_indices = @transform_2, window_bounds = array<i64: 4, 1>}, {transform_indices = @transform_3, window_bounds = array<i64: 1, 1, 1, 256>}, {transform_indices = @transform_4, window_bounds = array<i64: 1, 1, 1, 256>}]} {
    %c0_i32 = arith.constant 0 : i32
    %0 = arith.cmpi eq, %arg2, %c0_i32 : i32
    %1 = arith.extui %0 : i1 to i32
    %c0_i32_0 = arith.constant 0 : i32
    %2 = arith.cmpi ne, %1, %c0_i32_0 : i32
    scf.if %2 {
      %cst_32 = arith.constant 0.000000e+00 : f32
      %57 = vector.broadcast %cst_32 : f32 to vector<1x1x1x256xf32>
      %c0_33 = arith.constant 0 : index
      %c0_34 = arith.constant 0 : index
      %c0_35 = arith.constant 0 : index
      %c0_36 = arith.constant 0 : index
      %58 = vector.load %arg6[%c0_33, %c0_34, %c0_35, %c0_36] : memref<1x1x1x256xf32, #tpu.memory_space<vmem>>, vector<1x1x1x256xf32>
      tpu.vector_store %arg6[%c0_33, %c0_34, %c0_35, %c0_36], %57 {strides = array<i32>} : memref<1x1x1x256xf32, #tpu.memory_space<vmem>>, vector<1x1x1x256xf32>,
      %cst_37 = arith.constant 0.000000e+00 : f32
      %59 = vector.broadcast %cst_37 : f32 to vector<1x1x1x256xf32>
      %c0_38 = arith.constant 0 : index
      %c0_39 = arith.constant 0 : index
      %c0_40 = arith.constant 0 : index
      %c0_41 = arith.constant 0 : index
      %60 = vector.load %arg7[%c0_38, %c0_39, %c0_40, %c0_41] : memref<1x1x1x256xf32, #tpu.memory_space<vmem>>, vector<1x1x1x256xf32>
      tpu.vector_store %arg7[%c0_38, %c0_39, %c0_40, %c0_41], %59 {strides = array<i32>} : memref<1x1x1x256xf32, #tpu.memory_space<vmem>>, vector<1x1x1x256xf32>,
    } else {
    }
    %c0 = arith.constant 0 : index
    %c0_1 = arith.constant 0 : index
    %c0_2 = arith.constant 0 : index
    %3 = vector.load %arg3[%c0, %c0_1, %c0_2] : memref<1x4x256xf32, #tpu.memory_space<vmem>>, vector<1x4x256xf32>
    %4 = vector.shape_cast %3 : vector<1x4x256xf32> to vector<4x256xf32>
    %c0_3 = arith.constant 0 : index
    %c0_4 = arith.constant 0 : index
    %c0_5 = arith.constant 0 : index
    %5 = vector.load %arg4[%c0_3, %c0_4, %c0_5] : memref<1x1x256xi32, #tpu.memory_space<vmem>>, vector<1x1x256xi32>
    %6 = vector.shape_cast %5 : vector<1x1x256xi32> to vector<1x256xi32>
    %c0_6 = arith.constant 0 : index
    %c0_7 = arith.constant 0 : index
    %7 = vector.load %arg5[%c0_6, %c0_7] : memref<4x1xf32, #tpu.memory_space<vmem>>, vector<4x1xf32>
    %8 = tpu.iota {dimensions = array<i32: 1>} : vector<1x256xi32>
    %c1_i32 = arith.constant 1 : i32
    %9 = arith.muli %arg1, %c1_i32 : i32
    %10 = arith.addi %9, %arg2 : i32
    %c256_i32 = arith.constant 256 : i32
    %11 = arith.muli %10, %c256_i32 : i32
    %12 = vector.broadcast %11 : i32 to vector<1x256xi32>
    %13 = arith.addi %12, %8 : vector<1x256xi32>
    %c256_i32_8 = arith.constant 256 : i32
    %14 = vector.broadcast %c256_i32_8 : i32 to vector<1x256xi32>
    %15 = arith.cmpi slt, %13, %14 : vector<1x256xi32>
    %cst = arith.constant dense<0xFF800000> : vector<256xf32>
    %16 = vector.multi_reduction <maximumf>, %4, %cst [0] : vector<4x256xf32> to vector<256xf32>
    %17 = vector.shape_cast %16 : vector<256xf32> to vector<1x256xf32>
    %18 = vector.broadcast %17 : vector<1x256xf32> to vector<4x256xf32>
    %19 = arith.subf %4, %18 : vector<4x256xf32>
    %20 = math.exp %19 : vector<4x256xf32>
    %cst_9 = arith.constant dense<0.000000e+00> : vector<256xf32>
    %21 = vector.multi_reduction <add>, %20, %cst_9 [0] : vector<4x256xf32> to vector<256xf32>
    %22 = vector.shape_cast %21 : vector<256xf32> to vector<1x256xf32>
    %23 = math.log %22 : vector<1x256xf32>
    %24 = arith.addf %17, %23 : vector<1x256xf32>
    %25 = tpu.iota {dimensions = array<i32: 0>} : vector<4x1xi32>
    %26 = vector.broadcast %25 : vector<4x1xi32> to vector<4x256xi32>
    %27 = vector.broadcast %6 : vector<1x256xi32> to vector<4x256xi32>
    %28 = arith.cmpi eq, %26, %27 : vector<4x256xi32>
    %cst_10 = arith.constant 0.000000e+00 : f32
    %29 = vector.broadcast %cst_10 : f32 to vector<4x256xf32>
    %30 = arith.select %28, %4, %29 : vector<4x256xi1>, vector<4x256xf32>
    %cst_11 = arith.constant dense<0.000000e+00> : vector<256xf32>
    %31 = vector.multi_reduction <add>, %30, %cst_11 [0] : vector<4x256xf32> to vector<256xf32>
    %32 = vector.shape_cast %31 : vector<256xf32> to vector<1x256xf32>
    %cst_12 = arith.constant 0.000000e+00 : f32
    %33 = vector.shape_cast %7 : vector<4x1xf32> to vector<4x1xf32>
    %34 = vector.broadcast %33 : vector<4x1xf32> to vector<4x256xf32>
    %35 = vector.broadcast %cst_12 : f32 to vector<4x256xf32>
    %36 = arith.select %28, %34, %35 : vector<4x256xi1>, vector<4x256xf32>
    %cst_13 = arith.constant dense<0.000000e+00> : vector<256xf32>
    %37 = vector.multi_reduction <add>, %36, %cst_13 [0] : vector<4x256xf32> to vector<256xf32>
    %38 = vector.shape_cast %37 : vector<256xf32> to vector<1x256xf32>
    %c0_14 = arith.constant 0 : index
    %c0_15 = arith.constant 0 : index
    %c0_16 = arith.constant 0 : index
    %c0_17 = arith.constant 0 : index
    %39 = vector.load %arg6[%c0_14, %c0_15, %c0_16, %c0_17] : memref<1x1x1x256xf32, #tpu.memory_space<vmem>>, vector<1x1x1x256xf32>
    %40 = vector.shape_cast %39 : vector<1x1x1x256xf32> to vector<1x256xf32>
    %41 = arith.subf %24, %32 : vector<1x256xf32>
    %42 = arith.mulf %38, %41 : vector<1x256xf32>
    %cst_18 = arith.constant 0.000000e+00 : f32
    %43 = vector.broadcast %cst_18 : f32 to vector<1x256xf32>
    %44 = arith.select %15, %42, %43 : vector<1x256xi1>, vector<1x256xf32>
    %45 = arith.addf %40, %44 : vector<1x256xf32>
    %c0_19 = arith.constant 0 : index
    %c0_20 = arith.constant 0 : index
    %c0_21 = arith.constant 0 : index
    %c0_22 = arith.constant 0 : index
    %46 = vector.load %arg6[%c0_19, %c0_20, %c0_21, %c0_22] : memref<1x1x1x256xf32, #tpu.memory_space<vmem>>, vector<1x1x1x256xf32>
    %47 = vector.shape_cast %46 : vector<1x1x1x256xf32> to vector<1x256xf32>
    %48 = vector.shape_cast %45 : vector<1x256xf32> to vector<1x1x1x256xf32>
    tpu.vector_store %arg6[%c0_19, %c0_20, %c0_21, %c0_22], %48 {strides = array<i32>} : memref<1x1x1x256xf32, #tpu.memory_space<vmem>>, vector<1x1x1x256xf32>,
    %c0_23 = arith.constant 0 : index
    %c0_24 = arith.constant 0 : index
    %c0_25 = arith.constant 0 : index
    %c0_26 = arith.constant 0 : index
    %49 = vector.load %arg7[%c0_23, %c0_24, %c0_25, %c0_26] : memref<1x1x1x256xf32, #tpu.memory_space<vmem>>, vector<1x1x1x256xf32>
    %50 = vector.shape_cast %49 : vector<1x1x1x256xf32> to vector<1x256xf32>
    %cst_27 = arith.constant 0.000000e+00 : f32
    %51 = vector.broadcast %cst_27 : f32 to vector<1x256xf32>
    %52 = arith.select %15, %38, %51 : vector<1x256xi1>, vector<1x256xf32>
    %53 = arith.addf %50, %52 : vector<1x256xf32>
    %c0_28 = arith.constant 0 : index
    %c0_29 = arith.constant 0 : index
    %c0_30 = arith.constant 0 : index
    %c0_31 = arith.constant 0 : index
    %54 = vector.load %arg7[%c0_28, %c0_29, %c0_30, %c0_31] : memref<1x1x1x256xf32, #tpu.memory_space<vmem>>, vector<1x1x1x256xf32>
    %55 = vector.shape_cast %54 : vector<1x1x1x256xf32> to vector<1x256xf32>
    %56 = vector.shape_cast %53 : vector<1x256xf32> to vector<1x1x1x256xf32>
    tpu.vector_store %arg7[%c0_28, %c0_29, %c0_30, %c0_31], %56 {strides = array<i32>} : memref<1x1x1x256xf32, #tpu.memory_space<vmem>>, vector<1x1x1x256xf32>,
    return
  }
  func.func @transform_0(%arg0: i32, %arg1: i32, %arg2: i32) -> (i32, i32, i32) {
    %c1_i32 = arith.constant 1 : i32
    %0 = arith.muli %arg1, %c1_i32 : i32
    %1 = arith.addi %0, %arg2 : i32
    %c0_i32 = arith.constant 0 : i32
    %2 = arith.minsi %1, %c0_i32 : i32
    %c0_i32_0 = arith.constant 0 : i32
    %c0_i32_1 = arith.constant 0 : i32
    return %arg0, %c0_i32_0, %2 : i32, i32, i32
  }
  func.func @transform_1(%arg0: i32, %arg1: i32, %arg2: i32) -> (i32, i32, i32) {
    %c1_i32 = arith.constant 1 : i32
    %0 = arith.muli %arg1, %c1_i32 : i32
    %1 = arith.addi %0, %arg2 : i32
    %c0_i32 = arith.constant 0 : i32
    %2 = arith.minsi %1, %c0_i32 : i32
    %c0_i32_0 = arith.constant 0 : i32
    %c0_i32_1 = arith.constant 0 : i32
    return %arg0, %c0_i32_0, %2 : i32, i32, i32
  }
  func.func @transform_2(%arg0: i32, %arg1: i32, %arg2: i32) -> (i32, i32) {
    %c0_i32 = arith.constant 0 : i32
    %c0_i32_0 = arith.constant 0 : i32
    %c0_i32_1 = arith.constant 0 : i32
    return %c0_i32, %c0_i32_0 : i32, i32
  }
  func.func @transform_3(%arg0: i32, %arg1: i32, %arg2: i32) -> (i32, i32, i32, i32) {
    %c0_i32 = arith.constant 0 : i32
    %c0_i32_0 = arith.constant 0 : i32
    %c0_i32_1 = arith.constant 0 : i32
    return %arg0, %arg1, %c0_i32, %c0_i32_0 : i32, i32, i32, i32
  }
  func.func @transform_4(%arg0: i32, %arg1: i32, %arg2: i32) -> (i32, i32, i32, i32) {
    %c0_i32 = arith.constant 0 : i32
    %c0_i32_0 = arith.constant 0 : i32
    %c0_i32_1 = arith.constant 0 : i32
    return %arg0, %arg1, %c0_i32, %c0_i32_0 : i32, i32, i32, i32
  }
}

</mosaic_0001>

<llo_original>
// kernel: tpu_custom_call.1
$region0: #{tpu_custom_call.1}
  #allocation0 [shape = 'u32[]', space=smem, size = 0x4, offset = 0x4, fixed_abs, tag = 'smem constant byte address 0x4 - core index']
  #allocation1 [shape = 'u32[144,128]{1,0:T(1,128)}', space=vmem, size = 0x12000, scoped, tag = 'internal scratch']
  %s0 = inlined_call_operand.hbm [shape: f32[2,4,256], index: 0, kind: input, shape index: {}]
  %s1 = inlined_call_operand.vmem [shape: s32[2,1,256], index: 1, kind: input, shape index: {}]
  %s2 = inlined_call_operand.vmem [shape: f32[4,1], index: 2, kind: input, shape index: {}]
  %s3 = inlined_call_operand.hbm [shape: f32[2,1,1,256], index: 3, kind: output, shape index: {0}]
  %s4 = inlined_call_operand.hbm [shape: f32[2,1,1,256], index: 4, kind: output, shape index: {1}]
  %5 = xla_tuple %s3, %s4
  %s6 = sld [smem:[#allocation0]]
  $region61: #{tpu_custom_call.1} parent=0
    _
  %s8 = ssub.s32 1, %s6
  %s9 = scalar_select 0, %s8, %s6
  $region1: #{tpu_custom_call.1} parent=0
    #allocation2 [shape = 'u8[8192]{0}', space=vmem, size = 0x2000, scoped, tag = 'input window, operand 0']
    #allocation3 [shape = 's32[2]{0}', space=sflag, size = 0x8, scoped, tag = 'scoped memory for tpu_custom_call.1']
    #allocation4 [shape = 's32[2]{0}', space=sflag, size = 0x8, scoped, tag = 'scoped memory for tpu_custom_call.1']
    #allocation5 [shape = 'u8[2048]{0}', space=vmem, size = 0x800, scoped, tag = 'output window, operand 0']
    #allocation6 [shape = 'u8[2048]{0}', space=vmem, size = 0x800, scoped, tag = 'output window, operand 1']
    #allocation7 [shape = 's32[2]{0}', space=sflag, size = 0x8, scoped, tag = 'scoped memory for tpu_custom_call.1']
    %10 = vsyncpa [#allocation3], 0
    %s11 = scalar_lea.sflag [#allocation3], 1
    %12 = vsyncpa %s11, 0
    %13 = vsyncpa [#allocation4], 0
    %s14 = scalar_lea.sflag [#allocation4], 1
    %15 = vsyncpa %s14, 0
    %16 = vsyncpa [#allocation7], 0
    %s17 = scalar_lea.sflag [#allocation7], 1
    %18 = vsyncpa %s17, 0
    loop: start=0, step=1, limit=4
    $region2: #{tpu_custom_call.1} parent=1 // loop_pre_header
      _
    $region3: #{tpu_custom_call.1} parent=1 // loop_header
      %s20 = sphi 0, %s24
      %p21 = scmp.ge.s32.totalorder %s20, 4
      %s27 = sphi 0, %s46
      %s28 = sphi 0, %s42
      %s29 = sphi 0, %s38
      %s30 = sphi 0, %s27
      %s31 = sphi 0, %s28
      %s32 = sphi 0, %s29
      %s33 = sphi 0, %s30
      %s34 = sphi 0, %s31
      %s35 = sphi 0, %s32
      %s57 = sphi 0, %s59
      %s60 = sphi 0, %s57
      %s61 = sphi 0, %s60
      %s77 = sphi 0, %s61
      %s91 = sphi 0, %s93
      %s94 = sphi 0, %s91
      %s95 = sphi 0, %s94
      %s111 = sphi 0, %s95
      %s115 = sphi 0, %s115
      %s117 = sphi 0, %s115
      %s118 = sphi 0, %s117
      %s132 = sphi 0, %s118
      %s140 = sphi 0, %s142
      %s143 = sphi 0, %s140
      %s144 = sphi 0, %s143
      %s160 = sphi 0, %s144
      %s168 = sphi 0, %s170
      %s171 = sphi 0, %s168
      %s172 = sphi 0, %s171
      %s188 = sphi 0, %s172
    $region4: #{tpu_custom_call.1} parent=1 // loop_header_branch
      %23 = sbr.rel (%p21) target = $region8
    $region5: #{tpu_custom_call.1} parent=1 // loop_body
      %s25 = ssub.s32 %s20, 1
      %s26 = ssub.s32 %s20, 2
      %s36 = sadd.s32 1, %s29
      %p37 = scmp.ge.s32.totalorder %s36, 1
      %s38 = scalar_select %p37, 0, %s36
      %s39 = sadd.s32 1, %s28
      %s40 = scalar_select %p37, %s39, %s28
      %p41 = scmp.ge.s32.totalorder %s40, 1
      %s42 = scalar_select %p41, 0, %s40
      %s43 = sadd.s32 1, %s27
      %s44 = scalar_select %p41, %s43, %s27
      %p45 = scmp.ge.s32.totalorder %s44, 2
      %s46 = scalar_select %p45, 0, %s44
      %s47 = sadd.s32 %s28, %s29
      %p48 = scmp.lt.s32.totalorder %s47, 0
      %s49 = scalar_select %p48, %s47, 0
      %s50 = sadd.s32 %s42, %s38
      %p51 = scmp.lt.s32.totalorder %s50, 0
      %s52 = scalar_select %p51, %s50, 0
      %s53 = ssub.s32 %s27, %s46
      %s54 = ssub.s32 %s49, %s52
      %s55 = sor.u32 %s53, %s54
      %p56 = scmp.eq.s32.totalorder %s55, 0
      %s58 = sadd.s32 %s57, 1
      %s59 = scalar_select %p56, %s57, %s58
      %p62 = pneg %p56
      %p63 = scmp.eq.s32.totalorder %s20, 1
      %p64 = por %p62, %p63
      %p65 = scmp.ne.s32.totalorder %s57, %s60
      %p66 = scmp.eq.s32.totalorder %s20, 0
      %p67 = por %p65, %p66
      %p68 = scmp.ne.s32.totalorder %s57, %s60
      %p69 = scmp.eq.s32.totalorder %s25, 1
      %p70 = por %p68, %p69
      %p71 = scmp.ne.s32.totalorder %s60, %s61
      %p72 = scmp.eq.s32.totalorder %s25, 0
      %p73 = por %p71, %p72
      %p74 = scmp.ne.s32.totalorder %s60, %s61
      %p75 = scmp.eq.s32.totalorder %s26, 1
      %p76 = por %p74, %p75
      %p78 = scmp.ne.s32.totalorder %s61, %s77
      %p79 = scmp.eq.s32.totalorder %s26, 0
      %p80 = por %p78, %p79
      %s81 = sadd.s32 %s28, %s29
      %p82 = scmp.lt.s32.totalorder %s81, 0
      %s83 = scalar_select %p82, %s81, 0
      %s84 = sadd.s32 %s42, %s38
      %p85 = scmp.lt.s32.totalorder %s84, 0
      %s86 = scalar_select %p85, %s84, 0
      %s87 = ssub.s32 %s27, %s46
      %s88 = ssub.s32 %s83, %s86
      %s89 = sor.u32 %s87, %s88
      %p90 = scmp.eq.s32.totalorder %s89, 0
      %s92 = sadd.s32 %s91, 1
      %s93 = scalar_select %p90, %s91, %s92
      %p96 = pneg %p90
      %p97 = scmp.eq.s32.totalorder %s20, 1
      %p98 = por %p96, %p97
      %p99 = scmp.ne.s32.totalorder %s91, %s94
      %p100 = scmp.eq.s32.totalorder %s20, 0
      %p101 = por %p99, %p100
      %p102 = scmp.ne.s32.totalorder %s91, %s94
      %p103 = scmp.eq.s32.totalorder %s25, 1
      %p104 = por %p102, %p103
      %p105 = scmp.ne.s32.totalorder %s94, %s95
      %p106 = scmp.eq.s32.totalorder %s25, 0
      %p107 = por %p105, %p106
      %p108 = scmp.ne.s32.totalorder %s94, %s95
      %p109 = scmp.eq.s32.totalorder %s26, 1
      %p110 = por %p108, %p109
      %p112 = scmp.ne.s32.totalorder %s95, %s111
      %p113 = scmp.eq.s32.totalorder %s26, 0
      %p114 = por %p112, %p113
      %s116 = sadd.s32 %s115, 1
      %p119 = scmp.eq.s32.totalorder %s20, 1
      %p120 = scmp.ne.s32.totalorder %s115, %s117
      %p121 = scmp.eq.s32.totalorder %s20, 0
      %p122 = por %p120, %p121
      %p123 = scmp.ne.s32.totalorder %s115, %s117
      %p124 = scmp.eq.s32.totalorder %s25, 1
      %p125 = por %p123, %p124
      %p126 = scmp.ne.s32.totalorder %s117, %s118
      %p127 = scmp.eq.s32.totalorder %s25, 0
      %p128 = por %p126, %p127
      %p129 = scmp.ne.s32.totalorder %s117, %s118
      %p130 = scmp.eq.s32.totalorder %s26, 1
      %p131 = por %p129, %p130
      %p133 = scmp.ne.s32.totalorder %s118, %s132
      %p134 = scmp.eq.s32.totalorder %s26, 0
      %p135 = por %p133, %p134
      %s136 = ssub.s32 %s27, %s46
      %s137 = ssub.s32 %s28, %s42
      %s138 = sor.u32 %s136, %s137
      %p139 = scmp.eq.s32.totalorder %s138, 0
      %s141 = sadd.s32 %s140, 1
      %s142 = scalar_select %p139, %s140, %s141
      %p145 = pneg %p139
      %p146 = scmp.eq.s32.totalorder %s20, 1
      %p147 = por %p145, %p146
      %p148 = scmp.ne.s32.totalorder %s140, %s143
      %p149 = scmp.eq.s32.totalorder %s20, 0
      %p150 = por %p148, %p149
      %p151 = scmp.ne.s32.totalorder %s140, %s143
      %p152 = scmp.eq.s32.totalorder %s25, 1
      %p153 = por %p151, %p152
      %p154 = scmp.ne.s32.totalorder %s143, %s144
      %p155 = scmp.eq.s32.totalorder %s25, 0
      %p156 = por %p154, %p155
      %p157 = scmp.ne.s32.totalorder %s143, %s144
      %p158 = scmp.eq.s32.totalorder %s26, 1
      %p159 = por %p157, %p158
      %p161 = scmp.ne.s32.totalorder %s144, %s160
      %p162 = scmp.eq.s32.totalorder %s26, 0
      %p163 = por %p161, %p162
      %s164 = ssub.s32 %s27, %s46
      %s165 = ssub.s32 %s28, %s42
      %s166 = sor.u32 %s164, %s165
      %p167 = scmp.eq.s32.totalorder %s166, 0
      %s169 = sadd.s32 %s168, 1
      %s170 = scalar_select %p167, %s168, %s169
      %p173 = pneg %p167
      %p174 = scmp.eq.s32.totalorder %s20, 1
      %p175 = por %p173, %p174
      %p176 = scmp.ne.s32.totalorder %s168, %s171
      %p177 = scmp.eq.s32.totalorder %s20, 0
      %p178 = por %p176, %p177
      %p179 = scmp.ne.s32.totalorder %s168, %s171
      %p180 = scmp.eq.s32.totalorder %s25, 1
      %p181 = por %p179, %p180
      %p182 = scmp.ne.s32.totalorder %s171, %s172
      %p183 = scmp.eq.s32.totalorder %s25, 0
      %p184 = por %p182, %p183
      %p185 = scmp.ne.s32.totalorder %s171, %s172
      %p186 = scmp.eq.s32.totalorder %s26, 1
      %p187 = por %p185, %p186
      %p189 = scmp.ne.s32.totalorder %s172, %s188
      %p190 = scmp.eq.s32.totalorder %s26, 0
      %p191 = por %p189, %p190
      %p192 = scmp.le.s32.totalorder 1, %s20
      %p193 = scmp.lt.s32.totalorder %s20, 3
      %p194 = pnand %p192, %p193
      %p195 = pneg %p194
      // Predicated region
      $region9: #{tpu_custom_call.1} parent=5 // pred_check
        _
      $region10: #{tpu_custom_call.1} parent=5 // pred_check_branch
        %197 = sbr.rel (%p194) target = $region12
      $region11: #{tpu_custom_call.1} parent=5 // pred_region
        %s198 = ssub.s32 %s20, 1
        // Predicated region
        $region13: #{tpu_custom_call.1} parent=11 // pred_check
          %p199 = pneg %p128
        $region14: #{tpu_custom_call.1} parent=11 // pred_check_branch
          %201 = sbr.rel (%p199) target = $region16
        $region15: #{tpu_custom_call.1} parent=11 // pred_region
          _
        $region16: #{tpu_custom_call.1} parent=11 // pred_fallthru
          _
      $region12: #{tpu_custom_call.1} parent=5 // pred_fallthru
        _
      %p202 = scmp.lt.s32.totalorder %s20, 2
      // Predicated region
      $region17: #{tpu_custom_call.1} parent=5 // pred_check
        %p203 = pneg %p202
      $region18: #{tpu_custom_call.1} parent=5 // pred_check_branch
        %205 = sbr.rel (%p203) target = $region20
      $region19: #{tpu_custom_call.1} parent=5 // pred_region
        // Predicated region
        $region21: #{tpu_custom_call.1} parent=19 // pred_check
          %p206 = pneg %p67
        $region22: #{tpu_custom_call.1} parent=19 // pred_check_branch
          %208 = sbr.rel (%p206) target = $region24
        $region23: #{tpu_custom_call.1} parent=19 // pred_region
          %s209 = sand.u32 %s57, 1
          %s210 = scalar_lea.sflag [#allocation3], %s209
          %s211 = sand.u32 %s57, 1
          %s212 = smul.addr %s211, 8
          %s213 = scalar_lea.vmem [#allocation2], %s212
          %s214 = sadd.s32 %s28, %s29
          %p215 = scmp.lt.s32.totalorder %s214, 0
          %s216 = scalar_select %p215, %s214, 0
          %s217 = smul.u32 2, %s216
          %s219 = ssub.s32 128, 128
          %220 = vsyncadd %s210, %s219
          %s221 = smul.addr %s27, 2
          %s222 = sadd.s32 %s217, %s221
          %s223 = smul.addr %s222, 64
          %s224 = scalar_lea.hbm %s0, %s223
          %s226 = sshll.u32 %s213, 4
          %s227 = int_to_ptr.vmem [resolvable:$true] %s226
          %229 = dma.hbm_to_vmem [thread:$0]  %s224, 128, %s227, %s210
        $region24: #{tpu_custom_call.1} parent=19 // pred_fallthru
          _
        // Predicated region
        $region25: #{tpu_custom_call.1} parent=19 // pred_check
          %p230 = pneg %p101
        $region26: #{tpu_custom_call.1} parent=19 // pred_check_branch
          %232 = sbr.rel (%p230) target = $region28
        $region27: #{tpu_custom_call.1} parent=19 // pred_region
          %s233 = sadd.s32 %s28, %s29
          %p234 = scmp.lt.s32.totalorder %s233, 0
          %s235 = scalar_select %p234, %s233, 0
          %s236 = smul.u32 2, %s235
          %p237 = scmp.lt.s32.totalorder %s27, 1
          %s238 = scalar_select %p237, %s27, 1
          %p239 = scmp.lt.s32.totalorder %s236, 1
          %s240 = scalar_select %p239, %s236, 1
          %s241 = smul.addr %s238, 2
          %s242 = sadd.s32 %s240, %s241
          %s243 = scalar_lea.vmem %s1, %s242
          %s244 = sadd.s32 %s28, %s29
          %p245 = scmp.lt.s32.totalorder %s244, 0
          %s246 = scalar_select %p245, %s244, 0
          %s247 = smul.u32 2, %s246
        $region28: #{tpu_custom_call.1} parent=19 // pred_fallthru
          _
      $region20: #{tpu_custom_call.1} parent=5 // pred_fallthru
        _
      %p248 = scmp.le.s32.totalorder 1, %s20
      %p249 = scmp.lt.s32.totalorder %s20, 3
      %p250 = pnand %p248, %p249
      %p251 = pneg %p250
      // Predicated region
      $region29: #{tpu_custom_call.1} parent=5 // pred_check
        _
      $region30: #{tpu_custom_call.1} parent=5 // pred_check_branch
        %253 = sbr.rel (%p250) target = $region32
      $region31: #{tpu_custom_call.1} parent=5 // pred_region
        %s254 = ssub.s32 %s20, 1
        %s255 = sand.u32 %s60, 1
        %s256 = scalar_lea.sflag [#allocation3], %s255
        %s257 = sand.u32 %s60, 1
        %s258 = smul.addr %s257, 8
        %s259 = scalar_lea.vmem [#allocation2], %s258
        // Predicated region
        $region33: #{tpu_custom_call.1} parent=31 // pred_check
          %p260 = pneg %p73
        $region34: #{tpu_custom_call.1} parent=31 // pred_check_branch
          %262 = sbr.rel (%p260) target = $region36
        $region35: #{tpu_custom_call.1} parent=31 // pred_region
          %263 = dma.done %s256, 128
        $region36: #{tpu_custom_call.1} parent=31 // pred_fallthru
          _
        %s264 = sand.u32 %s60, 1
        %s265 = scalar_lea.sflag [#allocation3], %s264
        %s266 = sand.u32 %s60, 1
        %s267 = smul.addr %s266, 8
        %s268 = scalar_lea.vmem [#allocation2], %s267
        %p269 = pneg %p73
        %p270 = pneg %p70
        %s271 = sadd.s32 %s31, %s32
        %p272 = scmp.lt.s32.totalorder %s271, 0
        %s273 = scalar_select %p272, %s271, 0
        %s274 = smul.u32 2, %s273
        %p275 = scmp.lt.s32.totalorder %s30, 1
        %s276 = scalar_select %p275, %s30, 1
        %p277 = scmp.lt.s32.totalorder %s274, 1
        %s278 = scalar_select %p277, %s274, 1
        %s279 = smul.addr %s276, 2
        %s280 = sadd.s32 %s278, %s279
        %s281 = scalar_lea.vmem %s1, %s280
        %p282 = pneg %p107
        %p283 = pneg %p104
        %p284 = pneg %p128
        %p285 = pneg %p125
        %p286 = pneg %p156
        %p287 = pneg %p153
        %s288 = sand.u32 %s143, 1
        %s289 = scalar_lea.sflag [#allocation4], %s288
        %s290 = sand.u32 %s143, 1
        %s291 = smul.addr %s290, 2
        %s292 = scalar_lea.vmem [#allocation5], %s291
        %p293 = pneg %p184
        %p294 = pneg %p181
        %s295 = sand.u32 %s171, 1
        %s296 = scalar_lea.sflag [#allocation7], %s295
        %s297 = sand.u32 %s171, 1
        %s298 = smul.addr %s297, 2
        %s299 = scalar_lea.vmem [#allocation6], %s298
        %s300 = sadd.s32 %s31, %s32
        %p301 = scmp.lt.s32.totalorder %s300, 0
        %s302 = scalar_select %p301, %s300, 0
        %s303 = smul.u32 2, %s302
        %s304 = sadd.s32 %s31, %s32
        %p305 = scmp.lt.s32.totalorder %s304, 0
        %s306 = scalar_select %p305, %s304, 0
        %s307 = smul.u32 2, %s306
        %p308 = scmp.lt.s32.totalorder %s30, 1
        %s309 = scalar_select %p308, %s30, 1
        %p310 = scmp.lt.s32.totalorder %s307, 1
        %s311 = scalar_select %p310, %s307, 1
        %s312 = smul.addr %s309, 2
        %s313 = sadd.s32 %s311, %s312
        %s314 = scalar_lea.vmem %s1, %s313
        %s315 = sadd.s32 %s31, %s32
        %p316 = scmp.lt.s32.totalorder %s315, 0
        %s317 = scalar_select %p316, %s315, 0
        %s318 = smul.u32 2, %s317
        %p319 = scmp.eq.s32.totalorder %s32, 0
        // Predicated region
        $region37: #{tpu_custom_call.1} parent=31 // pred_check
          %p320 = pneg %p319
        $region38: #{tpu_custom_call.1} parent=31 // pred_check_branch
          %322 = sbr.rel (%p320) target = $region40
        $region39: #{tpu_custom_call.1} parent=31 // pred_region
          %v323 = vlaneseq
          %vm324 = vcmp.ge.s32.totalorder %v323, 0
          %vm325 = vcmp.lt.s32.totalorder %v323, 256
          %vm326 = vmand %vm324, %vm325
          %327 = vst.msk [vmem:[%s292] sm:$0x3] %vm326, 0.0
          %328 = vst.msk [vmem:[%s299] sm:$0x3] %vm326, 0.0
        $region40: #{tpu_custom_call.1} parent=31 // pred_fallthru
          _
        %v329 = vld [vmem:[%s259] sm:$0xff]
        %v330 = vld [vmem:[%s314] sm:$0x3]
        %v331 = vld [vmem:[%s2] sm:$0xf]
        %v332 = vlaneseq
        %v333 = vand.u32 %v332, 127
        %v334 = vadd.s32 %v333, 128
        %s335 = sadd.s32 %s31, %s32
        %s336 = smul.u32 %s335, 256
        %v337 = vstv %s336
        %v338 = vadd.s32 %v337, %v333
        %v339 = vadd.s32 %v337, %v334
        %vm340 = vcmp.lt.s32.totalorder %v338, 256
        %vm341 = vcmp.lt.s32.totalorder %v339, 256
        %v343 = vcombine.high %v329, %v329
        %vm345 = vcmask 1043456
        %v346 = vsel %vm345, %v329, -inf
        %v347 = vrot.slane %v346, 4
        %v348 = vmax.f32 %v346, %v347
        %v349 = vrot.slane %v348, 2
        %v350 = vmax.f32 %v348, %v349
        %v351 = vrot.slane %v350, 1
        %v352 = vmax.f32 %v350, %v351
        %v353 = vsel %vm345, %v343, -inf
        %v354 = vrot.slane %v353, 4
        %v355 = vmax.f32 %v353, %v354
        %v356 = vrot.slane %v355, 2
        %v357 = vmax.f32 %v355, %v356
        %v358 = vrot.slane %v357, 1
        %v359 = vmax.f32 %v357, %v358
        %v362 = vcombine.low %v352, %v359
        %v364 = vsub.f32 %v329, %v362
        %v365 = vmul.f32 %v364, 1.442695
        %v366 = vpow.pop %v365
        %v368 = vcombine.high %v366, %v366
        %v370 = vsel %vm345, %v366, 0.0
        %v371 = vrot.slane %v370, 4
        %v372 = vadd.f32 %v370, %v371
        %v373 = vrot.slane %v372, 2
        %v374 = vadd.f32 %v372, %v373
        %v375 = vrot.slane %v374, 1
        %v376 = vadd.f32 %v374, %v375
        %v377 = vsel %vm345, %v368, 0.0
        %v378 = vrot.slane %v377, 4
        %v379 = vadd.f32 %v377, %v378
        %v380 = vrot.slane %v379, 2
        %v381 = vadd.f32 %v379, %v380
        %v382 = vrot.slane %v381, 1
        %v383 = vadd.f32 %v381, %v382
        %v384 = vlog2.pop %v376
        %v385 = vmul.f32 %v384, 0.6931472
        %v386 = vlog2.pop %v383
        %v387 = vmul.f32 %v386, 0.6931472
        %v388 = vadd.f32 %v352, %v385
        %v389 = vadd.f32 %v359, %v387
        %v390 = vlaneseq
        %v391 = vshrl.u32 %v390, 7
        %v392 = vlaneseq
        %v393 = vshrl.u32 %v392, 7
        %v394 = vsub.s32 0, %v393
        %v395 = vrot.slane %v330, %v394
        %v396 = vlaneseq
        %v397 = vshrl.u32 %v396, 7
        %v398 = vsub.s32 1, %v397
        %v399 = vrot.slane %v330, %v398
        %vm400 = vcmp.eq.s32.totalorder %v391, %v395
        %vm401 = vcmp.eq.s32.totalorder %v391, %v399
        %v402 = vsel %vm400, %v329, 0.0
        %v403 = vsel %vm401, %v343, 0.0
        %v404 = vsel %vm345, %v402, 0.0
        %v405 = vrot.slane %v404, 4
        %v406 = vadd.f32 %v404, %v405
        %v407 = vrot.slane %v406, 2
        %v408 = vadd.f32 %v406, %v407
        %v409 = vrot.slane %v408, 1
        %v410 = vadd.f32 %v408, %v409
        %v411 = vsel %vm345, %v403, 0.0
        %v412 = vrot.slane %v411, 4
        %v413 = vadd.f32 %v411, %v412
        %v414 = vrot.slane %v413, 2
        %v415 = vadd.f32 %v413, %v414
        %v416 = vrot.slane %v415, 1
        %v417 = vadd.f32 %v415, %v416
        %419 = vset.pattern.permute.xlu0 0
        %420 = vperm.xlu0 %419, %v331
        %v421 = vpop.permute.xlu0 %420
        %v423 = vsel %vm400, %v421, 0.0
        %v424 = vsel %vm401, %v421, 0.0
        %v425 = vsel %vm345, %v423, 0.0
        %v426 = vrot.slane %v425, 4
        %v427 = vadd.f32 %v425, %v426
        %v428 = vrot.slane %v427, 2
        %v429 = vadd.f32 %v427, %v428
        %v430 = vrot.slane %v429, 1
        %v431 = vadd.f32 %v429, %v430
        %v432 = vsel %vm345, %v424, 0.0
        %v433 = vrot.slane %v432, 4
        %v434 = vadd.f32 %v432, %v433
        %v435 = vrot.slane %v434, 2
        %v436 = vadd.f32 %v434, %v435
        %v437 = vrot.slane %v436, 1
        %v438 = vadd.f32 %v436, %v437
        %v439 = vld [vmem:[%s292] sm:$0x3]
        %v440 = vsub.f32 %v388, %v410
        %v441 = vsub.f32 %v389, %v417
        %v442 = vmul.f32 %v431, %v440
        %v443 = vmul.f32 %v438, %v441
        %v444 = vsel %vm340, %v442, 0.0
        %v445 = vsel %vm341, %v443, 0.0
        %v448 = vcombine.low %v444, %v445
        %v450 = vunpack.c.l.s4 1966171168
        %v451 = vunpack.c.0.s8 %v450
        %v452 = vlaneseq
        %v453 = vshrl.u32 %v452, 7
        %v454 = vsub.s32 %v451, %v453
        %v455 = vrot.slane %v448, %v454
        %v457 = vunpack.c.l.s4 1966171168
        %v458 = vunpack.c.0.s8 %v457
        %v459 = vlaneseq
        %v460 = vshrl.u32 %v459, 7
        %v461 = vsub.s32 %v458, %v460
        %v462 = vrot.slane %v455, %v461
        %v464 = vadd.f32 %v439, %v462
        %v465 = vlaneseq
        %vm466 = vcmp.ge.s32.totalorder %v465, 0
        %vm467 = vcmp.lt.s32.totalorder %v465, 256
        %vm468 = vmand %vm466, %vm467
        %469 = vst.msk [vmem:[%s292] sm:$0x3] %vm468, %v464
        %v470 = vld [vmem:[%s299] sm:$0x3]
        %v471 = vsel %vm340, %v431, 0.0
        %v472 = vsel %vm341, %v438, 0.0
        %v475 = vcombine.low %v471, %v472
        %v477 = vunpack.c.l.s4 1966171168
        %v478 = vunpack.c.0.s8 %v477
        %v479 = vlaneseq
        %v480 = vshrl.u32 %v479, 7
        %v481 = vsub.s32 %v478, %v480
        %v482 = vrot.slane %v475, %v481
        %v484 = vunpack.c.l.s4 1966171168
        %v485 = vunpack.c.0.s8 %v484
        %v486 = vlaneseq
        %v487 = vshrl.u32 %v486, 7
        %v488 = vsub.s32 %v485, %v487
        %v489 = vrot.slane %v482, %v488
        %v491 = vadd.f32 %v470, %v489
        %492 = vst.msk [vmem:[%s299] sm:$0x3] %vm468, %v491
        %s493 = sand.u32 %s143, 1
        %s494 = scalar_lea.sflag [#allocation4], %s493
        %s495 = sand.u32 %s143, 1
        %s496 = smul.addr %s495, 2
        %s497 = scalar_lea.vmem [#allocation5], %s496
        %s498 = sand.u32 %s171, 1
        %s499 = scalar_lea.sflag [#allocation7], %s498
        %s500 = sand.u32 %s171, 1
        %s501 = smul.addr %s500, 2
        %s502 = scalar_lea.vmem [#allocation6], %s501
        // Predicated region
        $region41: #{tpu_custom_call.1} parent=31 // pred_check
          %p503 = pneg %p153
        $region42: #{tpu_custom_call.1} parent=31 // pred_check_branch
          %505 = sbr.rel (%p503) target = $region44
        $region43: #{tpu_custom_call.1} parent=31 // pred_region
          %s507 = ssub.s32 32, 32
          %508 = vsyncadd %s494, %s507
          %s509 = smul.addr %s31, 2
          %s510 = smul.addr %s30, 2
          %s511 = sadd.s32 %s509, %s510
          %s512 = smul.addr %s511, 16
          %s513 = scalar_lea.hbm %s3, %s512
          %s515 = sshll.u32 %s497, 4
          %s516 = int_to_ptr.vmem [resolvable:$true] %s515
          %518 = dma.vmem_to_hbm [thread:$0]  %s516, 32, %s513, %s494
        $region44: #{tpu_custom_call.1} parent=31 // pred_fallthru
          _
        // Predicated region
        $region45: #{tpu_custom_call.1} parent=31 // pred_check
          %p519 = pneg %p181
        $region46: #{tpu_custom_call.1} parent=31 // pred_check_branch
          %521 = sbr.rel (%p519) target = $region48
        $region47: #{tpu_custom_call.1} parent=31 // pred_region
          %s523 = ssub.s32 32, 32
          %524 = vsyncadd %s499, %s523
          %s525 = smul.addr %s31, 2
          %s526 = smul.addr %s30, 2
          %s527 = sadd.s32 %s525, %s526
          %s528 = smul.addr %s527, 16
          %s529 = scalar_lea.hbm %s4, %s528
          %s531 = sshll.u32 %s502, 4
          %s532 = int_to_ptr.vmem [resolvable:$true] %s531
          %534 = dma.vmem_to_hbm [thread:$0]  %s532, 32, %s529, %s499
        $region48: #{tpu_custom_call.1} parent=31 // pred_fallthru
          _
      $region32: #{tpu_custom_call.1} parent=5 // pred_fallthru
        _
      %p535 = scmp.le.s32.totalorder 2, %s20
      // Predicated region
      $region49: #{tpu_custom_call.1} parent=5 // pred_check
        %p536 = pneg %p535
      $region50: #{tpu_custom_call.1} parent=5 // pred_check_branch
        %538 = sbr.rel (%p536) target = $region52
      $region51: #{tpu_custom_call.1} parent=5 // pred_region
        %s539 = ssub.s32 %s20, 2
        // Predicated region
        $region53: #{tpu_custom_call.1} parent=51 // pred_check
          %p540 = pneg %p159
        $region54: #{tpu_custom_call.1} parent=51 // pred_check_branch
          %542 = sbr.rel (%p540) target = $region56
        $region55: #{tpu_custom_call.1} parent=51 // pred_region
          %s543 = sand.u32 %s144, 1
          %s544 = scalar_lea.sflag [#allocation4], %s543
          %s545 = sand.u32 %s144, 1
          %s546 = smul.addr %s545, 2
          %s547 = scalar_lea.vmem [#allocation5], %s546
          %548 = dma.done %s544, 32
        $region56: #{tpu_custom_call.1} parent=51 // pred_fallthru
          _
        // Predicated region
        $region57: #{tpu_custom_call.1} parent=51 // pred_check
          %p549 = pneg %p187
        $region58: #{tpu_custom_call.1} parent=51 // pred_check_branch
          %551 = sbr.rel (%p549) target = $region60
        $region59: #{tpu_custom_call.1} parent=51 // pred_region
          %s552 = sand.u32 %s172, 1
          %s553 = scalar_lea.sflag [#allocation7], %s552
          %s554 = sand.u32 %s172, 1
          %s555 = smul.addr %s554, 2
          %s556 = scalar_lea.vmem [#allocation6], %s555
          %557 = dma.done %s553, 32
        $region60: #{tpu_custom_call.1} parent=51 // pred_fallthru
          _
      $region52: #{tpu_custom_call.1} parent=5 // pred_fallthru
        _
    $region6: #{tpu_custom_call.1} parent=1 // loop_footer
      %s24 = sadd.s32 1, %s20
    $region7: #{tpu_custom_call.1} parent=1 // loop_footer_branch
      %19 = sbr.rel target = $region3
    $region8: #{tpu_custom_call.1} parent=1 // loop_exit
      _
    %558 = vsyncpa [#allocation3], 1
    %s559 = scalar_lea.sflag [#allocation3], 1
    %560 = vsyncpa %s559, 1
    %561 = vsyncpa [#allocation4], 1
    %s562 = scalar_lea.sflag [#allocation4], 1
    %563 = vsyncpa %s562, 1
    %564 = vsyncpa [#allocation7], 1
    %s565 = scalar_lea.sflag [#allocation7], 1
    %566 = vsyncpa %s565, 1

</llo_original>
